<compile_context>
chip_gen: v7x
topology: tpu7x:2x2x1
jax: 0.10.0
libtpu: 0.0.40
codegen_flags: <defaults>
</compile_context>

<pallas_src>
import functools

import numpy as np
import jax
import jax.numpy as jnp
from jax.experimental import pallas as pl
from jax.experimental.pallas import tpu as pltpu


# ----------------------------------------------------------------------------
# Fused ResidualBlock kernel: one batch-block (Bt whole sequences) per step
# ----------------------------------------------------------------------------
def residual_block_kernel(x_ref, w1big_ref, w2s_ref, bias_ref, o_ref, *, seq_len):
    # x_ref    : (Cin_p, Bt*L)      channel-major input slab (batch in lanes)
    # w1big_ref: (2*Cout_p, 3*Cin_p) [conv1 taps * BN1-scale ; skip W @ centre tap]
    # w2s_ref  : (Cout_p, 3*Cout_p)  conv2 taps * BN2-scale
    # bias_ref : (3, Cout_p, 1)      [BN1 shift(+b1), skip bias, BN2 shift(+b2)]
    # o_ref    : (Cout_p, Bt*L)
    cout_p, bl = o_ref.shape
    x = x_ref[...]

    # Halo handling via XLU rolls + boundary masks (no padded layout, no scratch).
    pos = jax.lax.broadcasted_iota(jnp.int32, (1, bl), 1) % seq_len
    has_left = pos != 0                 # column has a valid l-1 neighbour
    has_right = pos != seq_len - 1      # column has a valid l+1 neighbour

    def tap_stack(v):
        # [v[:, l-1] ; v[:, l] ; v[:, l+1]] stacked along the contraction dim.
        # The masks zero the sequence edges (and any cross-batch wrap-around).
        left = jnp.where(has_left, pltpu.roll(v, 1, axis=1), 0.0)
        right = jnp.where(has_right, pltpu.roll(v, bl - 1, axis=1), 0.0)
        return jnp.concatenate([left, v, right], axis=0)

    # conv1 (k=3, BN1 scale folded into W) fused with the 1x1 skip conv:
    # one MXU matmul, rows [0:Cout]=conv1 pre-act, rows [Cout:2*Cout]=skip.
    y = jnp.dot(w1big_ref[...], tap_stack(x), preferred_element_type=jnp.float32)
    h1 = jnp.maximum(y[:cout_p] + bias_ref[0], 0.0)      # BN1 shift (conv1 bias folded)
    skip = y[cout_p:] + bias_ref[1]                      # skip-conv bias

    # conv2 (k=3, BN2 folded) as one tap-stacked matmul; h1 never leaves VMEM.
    h2 = jnp.maximum(
        jnp.dot(w2s_ref[...], tap_stack(h1), preferred_element_type=jnp.float32)
        + bias_ref[2], 0.0)

    # residual add + final ReLU, lane-dense store
    o_ref[...] = jnp.maximum(h2 + skip, 0.0).astype(o_ref.dtype)


def _pick_batch_tile(B, L, target_lanes=2048):
    # Whole batch per step if it is small; otherwise the largest divisor of B
    # whose lane extent (Bt*L) is a multiple of 128 and <= target_lanes.
    if B * L <= target_lanes:
        return B
    cands = [bt for bt in range(1, B + 1)
             if B % bt == 0 and (bt * L) % 128 == 0 and bt * L <= target_lanes]
    return max(cands) if cands else B


def residual_block(x_ncl, p):
    # x_ncl: [B, Cin, L] (PyTorch NCL) -> [B, Cout, L]
    B, Cin, L = x_ncl.shape
    two_cout_p, three_cin_p = p["w1big"].shape
    Cout_p, Cin_p = two_cout_p // 2, three_cin_p // 3
    Cout = p["cout"]

    # Layout plumbing: channel-major slab with the batch folded into the lane
    # axis; channels zero-padded to the 8-sublane multiple.  No halo padding.
    xt = jnp.transpose(x_ncl, (1, 0, 2)).reshape(Cin, B * L)
    if Cin_p != Cin:
        xt = jnp.pad(xt, ((0, Cin_p - Cin), (0, 0)))

    Bt = _pick_batch_tile(B, L)
    grid = (B // Bt,)
    BLt = Bt * L

    out_flat = pl.pallas_call(
        functools.partial(residual_block_kernel, seq_len=L),
        out_shape=jax.ShapeDtypeStruct((Cout_p, B * L), jnp.float32),
        grid=grid,
        in_specs=[
            pl.BlockSpec((Cin_p, BLt), lambda i: (0, i)),             # x slab
            pl.BlockSpec((2 * Cout_p, 3 * Cin_p), lambda i: (0, 0)),  # conv1+skip W
            pl.BlockSpec((Cout_p, 3 * Cout_p), lambda i: (0, 0)),     # conv2 W
            pl.BlockSpec((3, Cout_p, 1), lambda i: (0, 0, 0)),        # packed biases
        ],
        out_specs=pl.BlockSpec((Cout_p, BLt), lambda i: (0, i)),
        compiler_params=pltpu.CompilerParams(
            dimension_semantics=("parallel",),
            vmem_limit_bytes=48 * 1024 * 1024),
    )(xt, p["w1big"], p["w2s"], p["bias"])

    return out_flat[:Cout].reshape(Cout, B, L).transpose(1, 0, 2)


# ----------------------------------------------------------------------------
# Parameters (PyTorch-style uniform fan-in init; BN folded in eval mode)
# ----------------------------------------------------------------------------
def make_params(cin, cout, seed=0):
    rup = lambda n, m: ((n + m - 1) // m) * m
    cin_p, cout_p = rup(cin, 8), rup(cout, 8)
    keys = iter(jax.random.split(jax.random.PRNGKey(seed), 8))
    eps = 1e-5

    def uni(key, shape, fan_in):
        s = 1.0 / float(np.sqrt(fan_in))
        return jax.random.uniform(key, shape, jnp.float32, -s, s)

    # raw PyTorch-shaped parameters (unpadded) -- kept for the reference path
    wskip = uni(next(keys), (cout, cin), cin)          # Conv1d k=1
    bskip = uni(next(keys), (cout,), cin)
    w1 = uni(next(keys), (cout, cin, 3), cin * 3)      # Conv1d k=3  (O, I, K)
    b1 = uni(next(keys), (cout,), cin * 3)
    w2 = uni(next(keys), (cout, cout, 3), cout * 3)
    b2 = uni(next(keys), (cout,), cout * 3)

    # BatchNorm1d eval-mode running stats / affine defaults, folded to scale/shift
    def bn_fold(b):
        gamma = jnp.ones((cout,), jnp.float32)
        beta = jnp.zeros((cout,), jnp.float32)
        mean = jnp.zeros((cout,), jnp.float32)
        var = jnp.ones((cout,), jnp.float32)
        scale = gamma / jnp.sqrt(var + eps)
        shift = beta + (b - mean) * scale              # conv bias folded in
        return scale, shift

    s1, t1 = bn_fold(b1)
    s2, t2 = bn_fold(b2)

    def pad_oc_ic(w, oc_p, ic_p):                      # (O, I) -> (O_p, I_p)
        return jnp.pad(w, ((0, oc_p - w.shape[0]), (0, ic_p - w.shape[1])))

    def stack_taps(w, s, oc_p, ic_p):                  # fold BN scale + tap-stack
        ws = w * s[:, None, None]                      # (O, I, 3)
        return jnp.concatenate(
            [pad_oc_ic(ws[:, :, k], oc_p, ic_p) for k in range(3)], axis=1)

    w1_stack = stack_taps(w1, s1, cout_p, cin_p)                      # (Cout_p, 3*Cin_p)
    skip_stack = jnp.concatenate(
        [jnp.zeros((cout_p, cin_p), jnp.float32),
         pad_oc_ic(wskip, cout_p, cin_p),
         jnp.zeros((cout_p, cin_p), jnp.float32)], axis=1)            # centre tap only
    w2_stack = stack_taps(w2, s2, cout_p, cout_p)                     # (Cout_p, 3*Cout_p)

    pad_vec = lambda v: jnp.pad(v, (0, cout_p - v.shape[0]))
    bias = jnp.stack([pad_vec(t1), pad_vec(bskip), pad_vec(t2)], axis=0)[..., None]

    return {
        "w1big": jnp.concatenate([w1_stack, skip_stack], axis=0),     # (2*Cout_p, 3*Cin_p)
        "w2s": w2_stack,
        "bias": bias.astype(jnp.float32),                             # (3, Cout_p, 1)
        "cout": cout,
        "ref": dict(wskip=wskip, bskip=bskip, w1=w1, b1=b1, w2=w2, b2=b2),
    }


# ----------------------------------------------------------------------------
# Pure-JAX reference (independent path via lax.conv) for correctness check
# ----------------------------------------------------------------------------
def residual_block_ref(x, pr):
    eps = 1e-5

    def convblock(inp, w, b):                          # w: (Cout, Cin, K) = OIH
        y = jax.lax.conv_general_dilated(
            inp, w, window_strides=(1,), padding=[(1, 1)],
            dimension_numbers=("NCH", "OIH", "NCH"))
        y = y + b[None, :, None]
        y = y / jnp.sqrt(1.0 + eps)                    # BN eval: mean 0, var 1, affine id
        return jnp.maximum(y, 0.0)

    skip = jnp.einsum("oc,bcl->bol", pr["wskip"], x) + pr["bskip"][None, :, None]
    h1 = convblock(x, pr["w1"], pr["b1"])
    h2 = convblock(h1, pr["w2"], pr["b2"])
    return jnp.maximum(h2 + skip, 0.0)


if __name__ == "__main__":
    B, Cin, Cout, L = 2, 4, 8, 16
    params = make_params(Cin, Cout, seed=0)
    x = jax.random.normal(jax.random.PRNGKey(0), (B, Cin, L), jnp.float32)

    out = jax.block_until_ready(residual_block(x, params))

    assert out.shape == (B, Cout, L), out.shape
    assert bool(jnp.all(jnp.isfinite(out)))
    assert bool(jnp.all(out >= 0.0))                   # final ReLU

    ref = jax.block_until_ready(residual_block_ref(x, params["ref"]))
    np.testing.assert_allclose(np.asarray(out), np.asarray(ref),
                               rtol=2e-5, atol=2e-5)
    print("KERNEL_OK")
</pallas_src>

<mosaic_0001>
module attributes {stable_mosaic.version = 11 : i64} {
  func.func @residual_block_kernel(%arg0: i32, %arg1: memref<8x32xf32, #tpu.memory_space<vmem>>, %arg2: memref<16x24xf32, #tpu.memory_space<vmem>>, %arg3: memref<8x24xf32, #tpu.memory_space<vmem>>, %arg4: memref<3x8x1xf32, #tpu.memory_space<vmem>>, %arg5: memref<8x32xf32, #tpu.memory_space<vmem>>) attributes {dimension_semantics = [#tpu.dimension_semantics<parallel>], iteration_bounds = array<i64: 1>, scalar_prefetch = 0 : i64, scratch_operands = 0 : i64, tpu.core_type = #tpu.core_type<tc>, window_params = [{transform_indices = @transform_0, window_bounds = array<i64: 8, 32>}, {pipeline_mode = #tpu.pipeline_mode<synchronous>, transform_indices = @transform_1, window_bounds = array<i64: 16, 24>}, {pipeline_mode = #tpu.pipeline_mode<synchronous>, transform_indices = @transform_2, window_bounds = array<i64: 8, 24>}, {pipeline_mode = #tpu.pipeline_mode<synchronous>, transform_indices = @transform_3, window_bounds = array<i64: 3, 8, 1>}, {transform_indices = @transform_4, window_bounds = array<i64: 8, 32>}]} {
    %c0 = arith.constant 0 : index
    %c0_0 = arith.constant 0 : index
    %0 = vector.load %arg1[%c0, %c0_0] : memref<8x32xf32, #tpu.memory_space<vmem>>, vector<8x32xf32>
    %1 = tpu.iota {dimensions = array<i32: 1>} : vector<1x32xi32>
    %c16_i32 = arith.constant 16 : i32
    %c0_i32 = arith.constant 0 : i32
    %2 = arith.cmpi eq, %c16_i32, %c0_i32 : i32
    %c1_i32 = arith.constant 1 : i32
    %3 = arith.select %2, %c1_i32, %c16_i32 : i32
    %4 = vector.broadcast %3 : i32 to vector<1x32xi32>
    %5 = arith.remsi %1, %4 : vector<1x32xi32>
    %c0_i32_1 = arith.constant 0 : i32
    %6 = vector.broadcast %c0_i32_1 : i32 to vector<1x32xi32>
    %7 = arith.cmpi ne, %5, %6 : vector<1x32xi32>
    %c0_i32_2 = arith.constant 0 : i32
    %8 = vector.broadcast %c0_i32_2 : i32 to vector<1x32xi32>
    %9 = arith.cmpi slt, %5, %8 : vector<1x32xi32>
    %c0_i32_3 = arith.constant 0 : i32
    %10 = arith.cmpi slt, %3, %c0_i32_3 : i32
    %11 = vector.broadcast %10 : i1 to vector<1x32xi1>
    %12 = vector.broadcast %11 : vector<1x32xi1> to vector<1x32xi1>
    %13 = arith.xori %9, %12 : vector<1x32xi1>
    %14 = arith.andi %13, %7 : vector<1x32xi1>
    %15 = vector.broadcast %3 : i32 to vector<1x32xi32>
    %16 = arith.addi %5, %15 : vector<1x32xi32>
    %17 = arith.select %14, %16, %5 : vector<1x32xi1>, vector<1x32xi32>
    %c0_i32_4 = arith.constant 0 : i32
    %18 = vector.broadcast %c0_i32_4 : i32 to vector<1x32xi32>
    %19 = arith.cmpi ne, %17, %18 : vector<1x32xi32>
    %c15_i32 = arith.constant 15 : i32
    %20 = vector.broadcast %c15_i32 : i32 to vector<1x32xi32>
    %21 = arith.cmpi ne, %17, %20 : vector<1x32xi32>
    %c0_5 = arith.constant 0 : index
    %c0_6 = arith.constant 0 : index
    %22 = vector.load %arg2[%c0_5, %c0_6] : memref<16x24xf32, #tpu.memory_space<vmem>>, vector<16x24xf32>
    %c1_i32_7 = arith.constant 1 : i32
    %23 = tpu.dynamic_rotate %0 by %c1_i32_7 dim 1 : vector<8x32xf32>, i32 -> vector<8x32xf32>
    %cst = arith.constant 0.000000e+00 : f32
    %24 = vector.shape_cast %19 : vector<1x32xi1> to vector<1x32xi1>
    %25 = vector.broadcast %24 : vector<1x32xi1> to vector<8x32xi1>
    %26 = vector.broadcast %cst : f32 to vector<8x32xf32>
    %27 = arith.select %25, %23, %26 : vector<8x32xi1>, vector<8x32xf32>
    %c31_i32 = arith.constant 31 : i32
    %28 = tpu.dynamic_rotate %0 by %c31_i32 dim 1 : vector<8x32xf32>, i32 -> vector<8x32xf32>
    %cst_8 = arith.constant 0.000000e+00 : f32
    %29 = vector.shape_cast %21 : vector<1x32xi1> to vector<1x32xi1>
    %30 = vector.broadcast %29 : vector<1x32xi1> to vector<8x32xi1>
    %31 = vector.broadcast %cst_8 : f32 to vector<8x32xf32>
    %32 = arith.select %30, %28, %31 : vector<8x32xi1>, vector<8x32xf32>
    %33 = tpu.concatenate %27, %0, %32 in 0 : vector<8x32xf32>, vector<8x32xf32>, vector<8x32xf32> -> vector<24x32xf32>
    %cst_9 = arith.constant dense<0.000000e+00> : vector<16x32xf32>
    %34 = tpu.matmul %22, %33, %cst_9 {dimension_numbers = #tpu.dot_dimension_numbers<[1], [0], [0], [1], [0, 0, 1, 1], [], []>} : vector<16x24xf32>, vector<24x32xf32>, vector<16x32xf32> -> vector<16x32xf32>
    %35 = vector.extract_strided_slice %34 {offsets = [0, 0], sizes = [8, 32], strides = [1, 1]} : vector<16x32xf32> to vector<8x32xf32>
    %c0_10 = arith.constant 0 : index
    %c0_11 = arith.constant 0 : index
    %c0_12 = arith.constant 0 : index
    %36 = vector.load %arg4[%c0_10, %c0_11, %c0_12] : memref<3x8x1xf32, #tpu.memory_space<vmem>>, vector<1x8x1xf32>
    %37 = vector.shape_cast %36 : vector<1x8x1xf32> to vector<8x1xf32>
    %38 = vector.broadcast %37 : vector<8x1xf32> to vector<8x32xf32>
    %39 = arith.addf %35, %38 : vector<8x32xf32>
    %cst_13 = arith.constant 0.000000e+00 : f32
    %40 = vector.broadcast %cst_13 : f32 to vector<8x32xf32>
    %41 = arith.maximumf %39, %40 : vector<8x32xf32>
    %42 = vector.extract_strided_slice %34 {offsets = [8, 0], sizes = [8, 32], strides = [1, 1]} : vector<16x32xf32> to vector<8x32xf32>
    %c1 = arith.constant 1 : index
    %c0_14 = arith.constant 0 : index
    %c0_15 = arith.constant 0 : index
    %43 = vector.load %arg4[%c1, %c0_14, %c0_15] : memref<3x8x1xf32, #tpu.memory_space<vmem>>, vector<1x8x1xf32>
    %44 = vector.shape_cast %43 : vector<1x8x1xf32> to vector<8x1xf32>
    %45 = vector.broadcast %44 : vector<8x1xf32> to vector<8x32xf32>
    %46 = arith.addf %42, %45 : vector<8x32xf32>
    %c0_16 = arith.constant 0 : index
    %c0_17 = arith.constant 0 : index
    %47 = vector.load %arg3[%c0_16, %c0_17] : memref<8x24xf32, #tpu.memory_space<vmem>>, vector<8x24xf32>
    %c1_i32_18 = arith.constant 1 : i32
    %48 = tpu.dynamic_rotate %41 by %c1_i32_18 dim 1 : vector<8x32xf32>, i32 -> vector<8x32xf32>
    %cst_19 = arith.constant 0.000000e+00 : f32
    %49 = vector.shape_cast %19 : vector<1x32xi1> to vector<1x32xi1>
    %50 = vector.broadcast %49 : vector<1x32xi1> to vector<8x32xi1>
    %51 = vector.broadcast %cst_19 : f32 to vector<8x32xf32>
    %52 = arith.select %50, %48, %51 : vector<8x32xi1>, vector<8x32xf32>
    %c31_i32_20 = arith.constant 31 : i32
    %53 = tpu.dynamic_rotate %41 by %c31_i32_20 dim 1 : vector<8x32xf32>, i32 -> vector<8x32xf32>
    %cst_21 = arith.constant 0.000000e+00 : f32
    %54 = vector.shape_cast %21 : vector<1x32xi1> to vector<1x32xi1>
    %55 = vector.broadcast %54 : vector<1x32xi1> to vector<8x32xi1>
    %56 = vector.broadcast %cst_21 : f32 to vector<8x32xf32>
    %57 = arith.select %55, %53, %56 : vector<8x32xi1>, vector<8x32xf32>
    %58 = tpu.concatenate %52, %41, %57 in 0 : vector<8x32xf32>, vector<8x32xf32>, vector<8x32xf32> -> vector<24x32xf32>
    %cst_22 = arith.constant dense<0.000000e+00> : vector<8x32xf32>
    %59 = tpu.matmul %47, %58, %cst_22 {dimension_numbers = #tpu.dot_dimension_numbers<[1], [0], [0], [1], [0, 0, 1, 1], [], []>} : vector<8x24xf32>, vector<24x32xf32>, vector<8x32xf32> -> vector<8x32xf32>
    %c2 = arith.constant 2 : index
    %c0_23 = arith.constant 0 : index
    %c0_24 = arith.constant 0 : index
    %60 = vector.load %arg4[%c2, %c0_23, %c0_24] : memref<3x8x1xf32, #tpu.memory_space<vmem>>, vector<1x8x1xf32>
    %61 = vector.shape_cast %60 : vector<1x8x1xf32> to vector<8x1xf32>
    %62 = vector.broadcast %61 : vector<8x1xf32> to vector<8x32xf32>
    %63 = arith.addf %59, %62 : vector<8x32xf32>
    %cst_25 = arith.constant 0.000000e+00 : f32
    %64 = vector.broadcast %cst_25 : f32 to vector<8x32xf32>
    %65 = arith.maximumf %63, %64 : vector<8x32xf32>
    %66 = arith.addf %65, %46 : vector<8x32xf32>
    %cst_26 = arith.constant 0.000000e+00 : f32
    %67 = vector.broadcast %cst_26 : f32 to vector<8x32xf32>
    %68 = arith.maximumf %66, %67 : vector<8x32xf32>
    %c0_27 = arith.constant 0 : index
    %c0_28 = arith.constant 0 : index
    %69 = vector.load %arg5[%c0_27, %c0_28] : memref<8x32xf32, #tpu.memory_space<vmem>>, vector<8x32xf32>
    tpu.vector_store %arg5[%c0_27, %c0_28], %68 {strides = array<i32>} : memref<8x32xf32, #tpu.memory_space<vmem>>, vector<8x32xf32>,
    return
  }
  func.func @transform_0(%arg0: i32) -> (i32, i32) {
    %c0_i32 = arith.constant 0 : i32
    %c0_i32_0 = arith.constant 0 : i32
    return %c0_i32, %arg0 : i32, i32
  }
  func.func @transform_1(%arg0: i32) -> (i32, i32) {
    %c0_i32 = arith.constant 0 : i32
    %c0_i32_0 = arith.constant 0 : i32
    %c0_i32_1 = arith.constant 0 : i32
    return %c0_i32, %c0_i32_0 : i32, i32
  }
  func.func @transform_2(%arg0: i32) -> (i32, i32) {
    %c0_i32 = arith.constant 0 : i32
    %c0_i32_0 = arith.constant 0 : i32
    %c0_i32_1 = arith.constant 0 : i32
    return %c0_i32, %c0_i32_0 : i32, i32
  }
  func.func @transform_3(%arg0: i32) -> (i32, i32, i32) {
    %c0_i32 = arith.constant 0 : i32
    %c0_i32_0 = arith.constant 0 : i32
    %c0_i32_1 = arith.constant 0 : i32
    %c0_i32_2 = arith.constant 0 : i32
    return %c0_i32, %c0_i32_0, %c0_i32_1 : i32, i32, i32
  }
  func.func @transform_4(%arg0: i32) -> (i32, i32) {
    %c0_i32 = arith.constant 0 : i32
    %c0_i32_0 = arith.constant 0 : i32
    return %c0_i32, %arg0 : i32, i32
  }
}

</mosaic_0001>

<llo_original>
// kernel: tpu_custom_call.1
$region0: #{tpu_custom_call.1}
  #allocation0 [shape = 'u32[]', space=smem, size = 0x4, offset = 0x4, fixed_abs, tag = 'smem constant byte address 0x4 - core index']
  #allocation1 [shape = 'u32[144,128]{1,0:T(1,128)}', space=vmem, size = 0x12000, scoped, tag = 'internal scratch']
  %s0 = inlined_call_operand.vmem [shape: f32[8,32], index: 0, kind: input, shape index: {}]
  %s1 = inlined_call_operand.vmem [shape: f32[16,24], index: 1, kind: input, shape index: {}]
  %s2 = inlined_call_operand.vmem [shape: f32[8,24], index: 2, kind: input, shape index: {}]
  %s3 = inlined_call_operand.vmem [shape: f32[3,8,1], index: 3, kind: input, shape index: {}]
  %s4 = inlined_call_operand.hbm [shape: f32[8,32], index: 4, kind: output, shape index: {}]
  %s5 = sld [smem:[#allocation0]]
  $region26: #{tpu_custom_call.1} parent=0
    _
  %s7 = ssub.s32 1, %s5
  %s8 = scalar_select 0, %s7, %s5
  $region1: #{tpu_custom_call.1} parent=0
    #allocation2 [shape = 'u8[4096]{0}', space=vmem, size = 0x1000, scoped, tag = 'output window, operand 0, single buffered']
    #allocation3 [shape = 's32[1]{0}', space=sflag, size = 0x4, scoped, tag = 'scoped memory for tpu_custom_call.1']
    %9 = vsyncpa [#allocation3], 0
    // Predicated region
    $region2: #{tpu_custom_call.1} parent=1 // pred_check
      _
    $region3: #{tpu_custom_call.1} parent=1 // pred_check_branch
      %11 = sbr.rel (0) target = $region5
    $region4: #{tpu_custom_call.1} parent=1 // pred_region
      _
    $region5: #{tpu_custom_call.1} parent=1 // pred_fallthru
      _
    // Predicated region
    $region6: #{tpu_custom_call.1} parent=1 // pred_check
      _
    $region7: #{tpu_custom_call.1} parent=1 // pred_check_branch
      %13 = sbr.rel (0) target = $region9
    $region8: #{tpu_custom_call.1} parent=1 // pred_region
      _
    $region9: #{tpu_custom_call.1} parent=1 // pred_fallthru
      _
    // Predicated region
    $region10: #{tpu_custom_call.1} parent=1 // pred_check
      _
    $region11: #{tpu_custom_call.1} parent=1 // pred_check_branch
      %15 = sbr.rel (0) target = $region13
    $region12: #{tpu_custom_call.1} parent=1 // pred_region
      _
    $region13: #{tpu_custom_call.1} parent=1 // pred_fallthru
      _
    // Predicated region
    $region14: #{tpu_custom_call.1} parent=1 // pred_check
      _
    $region15: #{tpu_custom_call.1} parent=1 // pred_check_branch
      %17 = sbr.rel (0) target = $region17
    $region16: #{tpu_custom_call.1} parent=1 // pred_region
      _
    $region17: #{tpu_custom_call.1} parent=1 // pred_fallthru
      _
    %v18 = vld [vmem:[%s0] sm:$0xff]
    %v19 = vlaneseq
    %v20 = vand.u32 %v19, 127
    %vm21 = vcmp.lt.s32.totalorder %v20, 0
    %v22 = vsub.s32 0, %v20
    %v23 = vsel %vm21, %v22, %v20
    %v24 = vshrl.u32 %v23, 4
    %v25 = vand.u32 %v23, 15
    %v26 = vsub.s32 0, %v25
    %v27 = vsel %vm21, %v26, %v25
    %vm28 = vcmp.ne.s32.totalorder %v27, 0
    %vm29 = vcmp.lt.s32.totalorder %v27, 0
    %vm30 = vmand %vm29, %vm28
    %v31 = vadd.s32 %v27, 16
    %v32 = vsel %vm30, %v31, %v27
    %vm33 = vcmp.ne.s32.totalorder %v32, 0
    %vm34 = vcmp.ne.s32.totalorder %v32, 15
    %v35 = vld [vmem:[%s1] sm:$0xff]
    %v36 = vld [vmem:[%s1 + $0x8] sm:$0xff]
    %vm37 = vcmask 1047808
    %38 = vrot.lane.b32.xlu0 %v18, 32
    %v39 = vpop.permute.xlu0 %38
    %v40 = vsel %vm37, %v39, %v18
    %41 = vrot.lane.b32.xlu0 %v40, 32
    %v42 = vpop.permute.xlu0 %41
    %v43 = vsel %vm37, %v42, %v18
    %v44 = vsel %vm33, 1, 0
    %vm45 = vcmp.eq.s32.totalorder %v44, 1
    %47 = vrot.lane.b32.xlu0 %v43, 97
    %v48 = vpop.permute.xlu0 %47
    %v50 = vsel %vm45, %v48, 0.0
    %v51 = vsel %vm34, 1, 0
    %vm52 = vcmp.eq.s32.totalorder %v51, 1
    %53 = vrot.lane.b32.xlu0 %v43, 127
    %v54 = vpop.permute.xlu0 %53
    %v56 = vsel %vm52, %v54, 0.0
    %vm57 = vcmask 195584
    %v59 = vsel %vm57, %v35, 0
    %v62 = vsel %vm57, %v36, 0
    %64 = vmatprep.subr.mxu0 0.0
    %65 = vmatpush1.msra.mxu0 %v50
    %66 = vmatprep.subr.mxu0 0.0
    %67 = vmatpush1.msra.mxu0 %v18
    %68 = vmatprep.subr.mxu0 0.0
    %69 = vmatpush1.msra.mxu0 %v56
    %70 = vmatprep.subr.mxu0 0.0
    %71 = vmatpush1.msra.mxu0 0.0
    %72 = vmatprep.subr.mxu0 0.0
    %73 = vmatpush1.msra.mxu0 0.0
    %74 = vmatprep.subr.mxu0 0.0
    %75 = vmatpush1.msra.mxu0 0.0
    %76 = vmatprep.subr.mxu0 0.0
    %77 = vmatpush1.msra.mxu0 0.0
    %78 = vmatprep.subr.mxu0 0.0
    %79 = vmatpush1.msra.mxu0 0.0
    %80 = vmatprep.subr.mxu0 0.0
    %81 = vmatpush1.msra.mxu0 0.0
    %82 = vmatprep.subr.mxu0 0.0
    %83 = vmatpush1.msra.mxu0 0.0
    %84 = vmatprep.subr.mxu0 0.0
    %85 = vmatpush1.msra.mxu0 0.0
    %86 = vmatprep.subr.mxu0 0.0
    %87 = vmatpush1.msra.mxu0 0.0
    %88 = vmatprep.subr.mxu0 0.0
    %89 = vmatpush1.msra.mxu0 0.0
    %90 = vmatprep.subr.mxu0 0.0
    %91 = vmatpush1.msra.mxu0 0.0
    %92 = vmatprep.subr.mxu0 0.0
    %93 = vmatpush1.msra.mxu0 0.0
    %94 = vmatprep.subr.mxu0 0.0
    %95 = vmatpush1.msra.mxu0 0.0
    %96 = vmatprep.subr.mxu0 0.0
    %97 = vmatpush1.msra.mxu0 0.0
    %98 = vmatprep.subr.mxu0 0.0
    %99 = vmatpush1.msra.mxu0 0.0
    %100 = vmatprep.subr.mxu0 0.0
    %101 = vmatpush1.msra.mxu0 0.0
    %102 = vmatprep.subr.mxu0 0.0
    %103 = vmatpush1.msra.mxu0 0.0
    %104 = vmatprep.subr.mxu0 0.0
    %105 = vmatpush1.msra.mxu0 0.0
    %106 = vmatprep.subr.mxu0 0.0
    %107 = vmatpush1.msra.mxu0 0.0
    %108 = vmatprep.subr.mxu0 0.0
    %109 = vmatpush1.msra.mxu0 0.0
    %110 = vmatprep.subr.mxu0 0.0
    %111 = vmatpush1.msra.mxu0 0.0
    %112 = vmatprep.subr.mxu0 0.0
    %113 = vmatpush1.msra.mxu0 0.0
    %114 = vmatprep.subr.mxu0 0.0
    %115 = vmatpush1.msra.mxu0 0.0
    %116 = vmatprep.subr.mxu0 0.0
    %117 = vmatpush1.msra.mxu0 0.0
    %118 = vmatprep.subr.mxu0 0.0
    %119 = vmatpush1.msra.mxu0 0.0
    %120 = vmatprep.subr.mxu0 0.0
    %121 = vmatpush1.msra.mxu0 0.0
    %122 = vmatprep.subr.mxu0 0.0
    %123 = vmatpush1.msra.mxu0 0.0
    %124 = vmatprep.subr.mxu0 0.0
    %125 = vmatpush1.msra.mxu0 0.0
    %126 = vmatprep.subr.mxu0 0.0
    %127 = vmatpush1.msra.mxu0 0.0
    %128 = vmatprep.mubr.f32.mxu0 0.0
    %129 = vmatmul.mubr.f32.gmra.mrb[0].mxu0 %v59
    %v130 = vpop.f32.mrb[0].mxu0
    %v131 = vadd.f32 0.0, %v130
    %v132 = vpop.f32.mrb[0].mxu0
    %133 = vmatprep.mubr.f32.mxu0 0.0
    %134 = vmatmul.mubr.f32.gmra.mrb[0].mxu0 %v62
    %v135 = vpop.f32.mrb[0].mxu0
    %v136 = vadd.f32 0.0, %v135
    %v137 = vpop.f32.mrb[0].mxu0
    %138 = vdwg.mxu0
    %v139 = vld [vmem:[%s3] sm:$0xff]
    %141 = vset.pattern.permute.xlu0 0
    %142 = vperm.xlu0 %141, %v139
    %v143 = vpop.permute.xlu0 %142
    %v145 = vadd.f32 %v131, %v143
    %v146 = vmax.f32 %v145, 0.0
    %s147 = scalar_lea.vmem %s3, 8
    %v148 = vld [vmem:[%s147] sm:$0xff]
    %150 = vset.pattern.permute.xlu0 0
    %151 = vperm.xlu0 %150, %v148
    %v152 = vpop.permute.xlu0 %151
    %v154 = vadd.f32 %v136, %v152
    %v155 = vld [vmem:[%s2] sm:$0xff]
    %156 = vrot.lane.b32.xlu0 %v146, 32
    %v157 = vpop.permute.xlu0 %156
    %v158 = vsel %vm37, %v157, %v146
    %159 = vrot.lane.b32.xlu0 %v158, 32
    %v160 = vpop.permute.xlu0 %159
    %v161 = vsel %vm37, %v160, %v146
    %163 = vrot.lane.b32.xlu0 %v161, 97
    %v164 = vpop.permute.xlu0 %163
    %v166 = vsel %vm45, %v164, 0.0
    %167 = vrot.lane.b32.xlu0 %v161, 127
    %v168 = vpop.permute.xlu0 %167
    %v170 = vsel %vm52, %v168, 0.0
    %s171 = scalar_lea.vmem %s3, 16
    %v172 = vld [vmem:[%s171] sm:$0xff]
    %174 = vset.pattern.permute.xlu0 0
    %175 = vperm.xlu0 %174, %v172
    %v176 = vpop.permute.xlu0 %175
    %v179 = vsel %vm57, %v155, 0
    %181 = vmatprep.subr.mxu0 0.0
    %182 = vmatpush1.msra.mxu0 %v166
    %183 = vmatprep.subr.mxu0 0.0
    %184 = vmatpush1.msra.mxu0 %v146
    %185 = vmatprep.subr.mxu0 0.0
    %186 = vmatpush1.msra.mxu0 %v170
    %187 = vmatprep.subr.mxu0 0.0
    %188 = vmatpush1.msra.mxu0 0.0
    %189 = vmatprep.subr.mxu0 0.0
    %190 = vmatpush1.msra.mxu0 0.0
    %191 = vmatprep.subr.mxu0 0.0
    %192 = vmatpush1.msra.mxu0 0.0
    %193 = vmatprep.subr.mxu0 0.0
    %194 = vmatpush1.msra.mxu0 0.0
    %195 = vmatprep.subr.mxu0 0.0
    %196 = vmatpush1.msra.mxu0 0.0
    %197 = vmatprep.subr.mxu0 0.0
    %198 = vmatpush1.msra.mxu0 0.0
    %199 = vmatprep.subr.mxu0 0.0
    %200 = vmatpush1.msra.mxu0 0.0
    %201 = vmatprep.subr.mxu0 0.0
    %202 = vmatpush1.msra.mxu0 0.0
    %203 = vmatprep.subr.mxu0 0.0
    %204 = vmatpush1.msra.mxu0 0.0
    %205 = vmatprep.subr.mxu0 0.0
    %206 = vmatpush1.msra.mxu0 0.0
    %207 = vmatprep.subr.mxu0 0.0
    %208 = vmatpush1.msra.mxu0 0.0
    %209 = vmatprep.subr.mxu0 0.0
    %210 = vmatpush1.msra.mxu0 0.0
    %211 = vmatprep.subr.mxu0 0.0
    %212 = vmatpush1.msra.mxu0 0.0
    %213 = vmatprep.subr.mxu0 0.0
    %214 = vmatpush1.msra.mxu0 0.0
    %215 = vmatprep.subr.mxu0 0.0
    %216 = vmatpush1.msra.mxu0 0.0
    %217 = vmatprep.subr.mxu0 0.0
    %218 = vmatpush1.msra.mxu0 0.0
    %219 = vmatprep.subr.mxu0 0.0
    %220 = vmatpush1.msra.mxu0 0.0
    %221 = vmatprep.subr.mxu0 0.0
    %222 = vmatpush1.msra.mxu0 0.0
    %223 = vmatprep.subr.mxu0 0.0
    %224 = vmatpush1.msra.mxu0 0.0
    %225 = vmatprep.subr.mxu0 0.0
    %226 = vmatpush1.msra.mxu0 0.0
    %227 = vmatprep.subr.mxu0 0.0
    %228 = vmatpush1.msra.mxu0 0.0
    %229 = vmatprep.subr.mxu0 0.0
    %230 = vmatpush1.msra.mxu0 0.0
    %231 = vmatprep.subr.mxu0 0.0
    %232 = vmatpush1.msra.mxu0 0.0
    %233 = vmatprep.subr.mxu0 0.0
    %234 = vmatpush1.msra.mxu0 0.0
    %235 = vmatprep.subr.mxu0 0.0
    %236 = vmatpush1.msra.mxu0 0.0
    %237 = vmatprep.subr.mxu0 0.0
    %238 = vmatpush1.msra.mxu0 0.0
    %239 = vmatprep.subr.mxu0 0.0
    %240 = vmatpush1.msra.mxu0 0.0
    %241 = vmatprep.subr.mxu0 0.0
    %242 = vmatpush1.msra.mxu0 0.0
    %243 = vmatprep.subr.mxu0 0.0
    %244 = vmatpush1.msra.mxu0 0.0
    %245 = vmatprep.mubr.f32.mxu0 0.0
    %246 = vmatmul.mubr.f32.gmra.mrb[0].mxu0 %v179
    %v247 = vpop.f32.mrb[0].mxu0
    %v248 = vadd.f32 %v176, %v247
    %v249 = vpop.f32.mrb[0].mxu0
    %250 = vdwg.mxu0
    %v251 = vmax.f32 %v248, 0.0
    %v252 = vadd.f32 %v251, %v154
    %v253 = vmax.f32 %v252, 0.0
    %vm254 = vcmask 261120
    %255 = vst.msk [vmem:[#allocation2] sm:$0xff] %vm254, %v253
    // Predicated region
    $region18: #{tpu_custom_call.1} parent=1 // pred_check
      _
    $region19: #{tpu_custom_call.1} parent=1 // pred_check_branch
      %257 = sbr.rel (0) target = $region21
    $region20: #{tpu_custom_call.1} parent=1 // pred_region
      %s259 = ssub.s32 128, 128
      %260 = vsyncadd [#allocation3], %s259
      %s262 = sshll.u32 [#allocation2], 4
      %s263 = int_to_ptr.vmem [resolvable:$true] %s262
      %265 = dma.vmem_to_hbm [thread:$0]  %s263, 128, %s4, [#allocation3]
    $region21: #{tpu_custom_call.1} parent=1 // pred_fallthru
      _
    // Predicated region
    $region22: #{tpu_custom_call.1} parent=1 // pred_check
      _
    $region23: #{tpu_custom_call.1} parent=1 // pred_check_branch
      %267 = sbr.rel (0) target = $region25
    $region24: #{tpu_custom_call.1} parent=1 // pred_region
      %268 = dma.done [#allocation3], 128
    $region25: #{tpu_custom_call.1} parent=1 // pred_fallthru
      _
    %269 = vsyncpa [#allocation3], 1

</llo_original>
